<compile_context>
chip_gen: v7x
topology: tpu7x:2x2x1
jax: 0.10.0
libtpu: 0.0.40
codegen_flags: <defaults>
</compile_context>

<pallas_src>
import jax
import jax.numpy as jnp
from jax import lax
from jax.experimental import pallas as pl
from jax.experimental.pallas import tpu as pltpu


# ----------------------------- Pallas kernel ---------------------------------

def _make_bottleneck_kernel(Hs, Ws, cb_mid):
    F = Hs * Ws

    def kernel(x_ref, a1t_ref, b1_ref, kdw_ref, a3_ref, b3_ref, o_ref):
        x = x_ref[...]                                          # (Cb_in, F) f32

        # 1x1 grouped conv #1 (block-diag dense; BN1 + channel shuffle folded) + ReLU.
        # Weights arrive already in bf16 (host-side cast); f32 accumulation on the MXU.
        y1 = jnp.dot(a1t_ref[...], x.astype(jnp.bfloat16),
                     preferred_element_type=jnp.float32) + b1_ref[...]
        y1 = jnp.maximum(y1, 0.0)                               # (cb_mid, F)

        # Per-image spatial edge masks from a lane iota over f = r*Ws + c (booleans,
        # generated at the full (cb_mid, F) tile shape so jnp.where needs no broadcast).
        idx = lax.broadcasted_iota(jnp.int32, (cb_mid, F), 1)
        if Ws & (Ws - 1) == 0:
            col = idx & (Ws - 1)                                # cheap power-of-two modulo
        else:
            col = jnp.remainder(idx, Ws)
        m_top = idx >= Ws                                       # row >= 1       (i == 0 taps)
        m_bot = idx < (Hs - 1) * Ws                             # row <= H-2     (i == 2 taps)
        m_lft = col >= 1                                        # col >= 1       (j == 0 taps)
        m_rgt = col <= Ws - 2                                   # col <= W-2     (j == 2 taps)
        masks = {
            (0, 0): m_top & m_lft, (0, 1): m_top, (0, 2): m_top & m_rgt,
            (1, 0): m_lft,                        (1, 2): m_rgt,
            (2, 0): m_bot & m_lft, (2, 1): m_bot, (2, 2): m_bot & m_rgt,
        }

        # Depthwise 3x3 (stride 1, pad 1): 9 static lane rolls of y1 (XLU), edge-masked.
        # All elementwise math stays f32 (v5e guard-rail: no bf16 VPU there).
        kdw = kdw_ref[...]                                      # (cb_mid, 9), col t = 3*i + j
        d = y1 * kdw[:, 4:5]                                    # center tap, no mask needed
        for i in range(3):
            for j in range(3):
                if i == 1 and j == 1:
                    continue
                off = (i - 1) * Ws + (j - 1)                    # flat offset of the tap
                tap = pltpu.roll(y1, shift=(-off) % F, axis=1)  # tap[f] = y1[f + off]
                tap = jnp.where(masks[(i, j)], tap, 0.0)        # zero-padding semantics
                t = 3 * i + j
                d = d + tap * kdw[:, t:t + 1]

        # 1x1 grouped conv #2 (BN2 + BN3 folded host-side).  Kept fully f32: K = cb_mid is
        # tiny, so this is nearly free and avoids downcasting the depthwise accumulator.
        y3 = jnp.dot(a3_ref[...], d, preferred_element_type=jnp.float32) + b3_ref[...]

        # Identity shortcut (stride == 1) + ReLU; lane-dense (F) store.
        o_ref[...] = jnp.maximum(x + y3, 0.0)

    return kernel


def _pick_images_per_block(n, c_mid, max_nb=8):
    """Largest divisor of n (capped) that fills the 8-row sublane axis if possible."""
    divs = [d for d in range(1, min(n, max_nb) + 1) if n % d == 0]
    full = [d for d in divs if (d * c_mid) % 8 == 0]
    return max(full) if full else max(divs)


def bottleneck_forward(x_nchw, a1t, b1, kdw, a3t, b3, images_per_block=None):
    """Fused BottleNeck forward (stride==1). x_nchw: (N, C_in, H, W) float32."""
    N, C_in, Hs, Ws = x_nchw.shape
    C_mid = a1t.shape[0]
    C_out = a3t.shape[0]
    assert C_in == C_out, "stride==1 identity-shortcut path requires C_in == C_out"
    F = Hs * Ws

    # Images per grid block: stack Nb images on the sublane/channel axis so the depthwise
    # tiles have >= 8 rows; keeps weight expansion (Nb x per-image) small.
    Nb = images_per_block or _pick_images_per_block(N, C_mid)
    if N % Nb != 0 or (N // Nb > 1 and ((Nb * C_in) % 8 or (Nb * C_out) % 8)):
        Nb = N                                   # fall back to a single big block
    num_blocks = N // Nb
    Cb_in, Cb_mid, Cb_out = Nb * C_in, Nb * C_mid, Nb * C_out

    # Host-side (one-time) block-diagonal expansion over Nb images + bf16 weight cast.
    eye = jnp.eye(Nb, dtype=jnp.float32)
    a1b = jnp.kron(eye, a1t).astype(jnp.bfloat16)   # (Cb_mid, Cb_in)  bf16, pre-cast
    a3b = jnp.kron(eye, a3t)                        # (Cb_out, Cb_mid) f32 (second dot stays f32)
    b1b = jnp.tile(b1, (Nb, 1))                     # (Cb_mid, 1)
    b3b = jnp.tile(b3, (Nb, 1))                     # (Cb_out, 1)
    kdwb = jnp.tile(kdw, (Nb, 1))                   # (Cb_mid, 9)

    # Flattened layout (N*C, H*W): pure reshapes only, no transposes on either side.
    x_flat = x_nchw.reshape(N * C_in, F)

    kernel = _make_bottleneck_kernel(Hs, Ws, Cb_mid)

    out_flat = pl.pallas_call(
        kernel,
        out_shape=jax.ShapeDtypeStruct((N * C_out, F), jnp.float32),
        grid_spec=pltpu.PrefetchScalarGridSpec(
            num_scalar_prefetch=0,
            grid=(num_blocks,),                     # 1 big step here; multiple "parallel"
            in_specs=[                              # blocks for larger N (feeds both v7x TCs)
                pl.BlockSpec((Cb_in, F), lambda b: (b, 0)),
                pl.BlockSpec((Cb_mid, Cb_in), lambda b: (0, 0)),
                pl.BlockSpec((Cb_mid, 1), lambda b: (0, 0)),
                pl.BlockSpec((Cb_mid, 9), lambda b: (0, 0)),
                pl.BlockSpec((Cb_out, Cb_mid), lambda b: (0, 0)),
                pl.BlockSpec((Cb_out, 1), lambda b: (0, 0)),
            ],
            out_specs=pl.BlockSpec((Cb_out, F), lambda b: (b, 0)),
        ),
        compiler_params=pltpu.CompilerParams(
            dimension_semantics=("parallel",),
            vmem_limit_bytes=32 * 1024 * 1024,      # explicit; safe on v5e/v6e/v7x
        ),
    )(x_flat, a1b, b1b, kdwb, a3b, b3b)

    return out_flat.reshape(N, C_out, Hs, Ws)


# -------------------------- parameter setup / folding ------------------------

def fold_bn(gamma, beta, mean, var, eps=1e-5):
    scale = gamma / jnp.sqrt(var + eps)
    return scale, beta - mean * scale


def build_params(key, in_channel, out_channel, groups):
    """Deterministic synthetic parameters matching BottleNeck.__init__ shapes."""
    g = 1 if in_channel == 24 else groups
    tmp = out_channel // 4  # expansion = 4

    ks = jax.random.split(key, 6)

    def bn_init(k, c):
        k1, k2, k3, k4 = jax.random.split(k, 4)
        gamma = 1.0 + 0.1 * jax.random.normal(k1, (c,), jnp.float32)
        beta = 0.1 * jax.random.normal(k2, (c,), jnp.float32)
        mean = 0.1 * jax.random.normal(k3, (c,), jnp.float32)
        var = 1.0 + 0.1 * jnp.abs(jax.random.normal(k4, (c,), jnp.float32))
        return gamma, beta, mean, var

    W1 = 0.2 * jax.random.normal(ks[0], (tmp, in_channel // g, 1, 1), jnp.float32)
    Wdw = 0.2 * jax.random.normal(ks[1], (tmp, 1, 3, 3), jnp.float32)
    W3 = 0.2 * jax.random.normal(ks[2], (out_channel, tmp // g, 1, 1), jnp.float32)
    return dict(g=g, tmp=tmp, W1=W1, Wdw=Wdw, W3=W3,
                bn1=bn_init(ks[3], tmp), bn2=bn_init(ks[4], tmp),
                bn3=bn_init(ks[5], out_channel))


def fold_params(p, in_channel, out_channel):
    """Fold BN (eval mode), channel shuffle, and BN2 into dense matmul weights.

    Returns per-image matrices laid out for the kernel's (C, F) layout:
      a1t: (C_mid, C_in), b1: (C_mid, 1), kdw: (C_mid, 9),
      a3t: (C_out, C_mid), b3: (C_out, 1).
    """
    g, tmp = p["g"], p["tmp"]
    W1, Wdw, W3 = p["W1"], p["Wdw"], p["W3"]
    s1, o1 = fold_bn(*p["bn1"])
    s2, o2 = fold_bn(*p["bn2"])
    s3, o3 = fold_bn(*p["bn3"])

    # Grouped 1x1 conv #1 as block-diagonal (C_in, tmp), BN1 folded.
    cig, cog = in_channel // g, tmp // g
    A1 = jnp.zeros((in_channel, tmp), jnp.float32)
    for gi in range(g):
        blk = W1[gi * cog:(gi + 1) * cog, :, 0, 0]              # (cog, cig)
        A1 = A1.at[gi * cig:(gi + 1) * cig, gi * cog:(gi + 1) * cog].set(blk.T)
    A1 = A1 * s1[None, :]
    b1 = o1

    # Fold channel shuffle (permutation of tmp channels) into conv #1 output columns.
    cpg = tmp // g
    perm = jnp.array([(k % g) * cpg + (k // g) for k in range(tmp)], jnp.int32)
    A1 = A1[:, perm]
    b1 = b1[perm]

    # Depthwise 3x3 taps, layout (tmp, 9): column t = 3*i + j holds Wdw[:, 0, i, j].
    kdw = Wdw[:, 0, :, :].reshape(tmp, 9)

    # Grouped 1x1 conv #2 as block-diagonal (tmp, C_out), BN3 folded; then BN2 folded in:
    #   (d*s2 + o2) @ A3 + b3  ==  d @ (diag(s2) @ A3) + (o2 @ A3 + b3)
    tig, cog3 = tmp // g, out_channel // g
    A3 = jnp.zeros((tmp, out_channel), jnp.float32)
    for gi in range(g):
        blk = W3[gi * cog3:(gi + 1) * cog3, :, 0, 0]            # (cog3, tig)
        A3 = A3.at[gi * tig:(gi + 1) * tig, gi * cog3:(gi + 1) * cog3].set(blk.T)
    A3 = A3 * s3[None, :]
    b3 = o2 @ A3 + o3
    A3 = A3 * s2[:, None]

    return (jnp.transpose(A1), b1.reshape(tmp, 1), kdw,
            jnp.transpose(A3), b3.reshape(out_channel, 1))


# ------------------------------ plain-JAX reference --------------------------

def _conv_nchw(x, w, stride, padding, groups):
    return lax.conv_general_dilated(
        x, w, window_strides=(stride, stride), padding=padding,
        dimension_numbers=("NCHW", "OIHW", "NCHW"),
        feature_group_count=groups,
        precision=lax.Precision.HIGHEST)


def _bn_eval(x, gamma, beta, mean, var, eps=1e-5):
    inv = gamma / jnp.sqrt(var + eps)
    return x * inv[None, :, None, None] + (beta - mean * inv)[None, :, None, None]


def reference_forward(x, p, stride):
    g, tmp = p["g"], p["tmp"]
    y = _conv_nchw(x, p["W1"], 1, "VALID", g)
    y = _bn_eval(y, *p["bn1"])
    y = jnp.maximum(y, 0.0)
    N, C, H, W = y.shape
    y = y.reshape(N, g, C // g, H, W).transpose(0, 2, 1, 3, 4).reshape(N, C, H, W)
    y = _conv_nchw(y, p["Wdw"], stride, ((1, 1), (1, 1)), tmp)
    y = _bn_eval(y, *p["bn2"])
    y = _conv_nchw(y, p["W3"], 1, "VALID", g)
    y = _bn_eval(y, *p["bn3"])
    return jnp.maximum(x + y, 0.0)          # stride == 1: identity shortcut + ReLU


# ----------------------------------- main -------------------------------------

if __name__ == "__main__":
    in_channel, out_channel, stride, groups = 16, 16, 1, 2
    N, Hs, Ws = 2, 16, 16
    assert stride == 1 and in_channel == out_channel  # config implemented here

    key = jax.random.PRNGKey(0)
    kx, kp = jax.random.split(key)
    x = jax.random.normal(kx, (N, in_channel, Hs, Ws), jnp.float32)

    params = build_params(kp, in_channel, out_channel, groups)
    a1t, b1, kdw, a3t, b3 = fold_params(params, in_channel, out_channel)

    out = bottleneck_forward(x, a1t, b1, kdw, a3t, b3)
    out = jax.block_until_ready(out)

    ref = reference_forward(x, params, stride)
    err = float(jnp.max(jnp.abs(out - ref)))
    # Tolerance covers the bf16-operand first matmul (f32 accumulation) vs the f32 reference;
    # the second matmul is now full f32, so the error budget is comfortably met.
    if not (err < 5e-2):
        raise AssertionError(f"mismatch vs reference: max abs err = {err}")
    print("KERNEL_OK")
</pallas_src>

<mosaic_0001>
module attributes {stable_mosaic.version = 11 : i64} {
  func.func @kernel(%arg0: i32, %arg1: memref<32x256xf32, #tpu.memory_space<vmem>>, %arg2: memref<8x32xbf16, #tpu.memory_space<vmem>>, %arg3: memref<8x1xf32, #tpu.memory_space<vmem>>, %arg4: memref<8x9xf32, #tpu.memory_space<vmem>>, %arg5: memref<32x8xf32, #tpu.memory_space<vmem>>, %arg6: memref<32x1xf32, #tpu.memory_space<vmem>>, %arg7: memref<32x256xf32, #tpu.memory_space<vmem>>) attributes {dimension_semantics = [#tpu.dimension_semantics<parallel>], iteration_bounds = array<i64: 1>, scalar_prefetch = 0 : i64, scratch_operands = 0 : i64, tpu.core_type = #tpu.core_type<tc>, window_params = [{transform_indices = @transform_0, window_bounds = array<i64: 32, 256>}, {pipeline_mode = #tpu.pipeline_mode<synchronous>, transform_indices = @transform_1, window_bounds = array<i64: 8, 32>}, {pipeline_mode = #tpu.pipeline_mode<synchronous>, transform_indices = @transform_2, window_bounds = array<i64: 8, 1>}, {pipeline_mode = #tpu.pipeline_mode<synchronous>, transform_indices = @transform_3, window_bounds = array<i64: 8, 9>}, {pipeline_mode = #tpu.pipeline_mode<synchronous>, transform_indices = @transform_4, window_bounds = array<i64: 32, 8>}, {pipeline_mode = #tpu.pipeline_mode<synchronous>, transform_indices = @transform_5, window_bounds = array<i64: 32, 1>}, {transform_indices = @transform_6, window_bounds = array<i64: 32, 256>}]} {
    %c0 = arith.constant 0 : index
    %c0_0 = arith.constant 0 : index
    %0 = vector.load %arg1[%c0, %c0_0] : memref<32x256xf32, #tpu.memory_space<vmem>>, vector<32x256xf32>
    %c0_1 = arith.constant 0 : index
    %c0_2 = arith.constant 0 : index
    %1 = vector.load %arg2[%c0_1, %c0_2] : memref<8x32xbf16, #tpu.memory_space<vmem>>, vector<8x32xbf16>
    %2 = arith.truncf %0 : vector<32x256xf32> to vector<32x256xbf16>
    %cst = arith.constant dense<0.000000e+00> : vector<8x256xf32>
    %3 = tpu.matmul %1, %2, %cst {dimension_numbers = #tpu.dot_dimension_numbers<[1], [0], [0], [1], [0, 0, 1, 1], [], []>} : vector<8x32xbf16>, vector<32x256xbf16>, vector<8x256xf32> -> vector<8x256xf32>
    %c0_3 = arith.constant 0 : index
    %c0_4 = arith.constant 0 : index
    %4 = vector.load %arg3[%c0_3, %c0_4] : memref<8x1xf32, #tpu.memory_space<vmem>>, vector<8x1xf32>
    %5 = vector.broadcast %4 : vector<8x1xf32> to vector<8x256xf32>
    %6 = arith.addf %3, %5 : vector<8x256xf32>
    %cst_5 = arith.constant 0.000000e+00 : f32
    %7 = vector.broadcast %cst_5 : f32 to vector<8x256xf32>
    %8 = arith.maximumf %6, %7 : vector<8x256xf32>
    %9 = tpu.iota {dimensions = array<i32: 1>} : vector<8x256xi32>
    %c15_i32 = arith.constant 15 : i32
    %10 = vector.broadcast %c15_i32 : i32 to vector<8x256xi32>
    %11 = arith.andi %9, %10 : vector<8x256xi32>
    %c16_i32 = arith.constant 16 : i32
    %12 = vector.broadcast %c16_i32 : i32 to vector<8x256xi32>
    %13 = arith.cmpi sge, %9, %12 : vector<8x256xi32>
    %c240_i32 = arith.constant 240 : i32
    %14 = vector.broadcast %c240_i32 : i32 to vector<8x256xi32>
    %15 = arith.cmpi slt, %9, %14 : vector<8x256xi32>
    %c1_i32 = arith.constant 1 : i32
    %16 = vector.broadcast %c1_i32 : i32 to vector<8x256xi32>
    %17 = arith.cmpi sge, %11, %16 : vector<8x256xi32>
    %c14_i32 = arith.constant 14 : i32
    %18 = vector.broadcast %c14_i32 : i32 to vector<8x256xi32>
    %19 = arith.cmpi sle, %11, %18 : vector<8x256xi32>
    %20 = arith.andi %13, %17 : vector<8x256xi1>
    %21 = arith.andi %13, %19 : vector<8x256xi1>
    %22 = arith.andi %15, %17 : vector<8x256xi1>
    %23 = arith.andi %15, %19 : vector<8x256xi1>
    %c0_6 = arith.constant 0 : index
    %c0_7 = arith.constant 0 : index
    %24 = vector.load %arg4[%c0_6, %c0_7] : memref<8x9xf32, #tpu.memory_space<vmem>>, vector<8x9xf32>
    %25 = vector.extract_strided_slice %24 {offsets = [0, 4], sizes = [8, 1], strides = [1, 1]} : vector<8x9xf32> to vector<8x1xf32>
    %26 = vector.broadcast %25 : vector<8x1xf32> to vector<8x256xf32>
    %27 = arith.mulf %8, %26 : vector<8x256xf32>
    %c17_i32 = arith.constant 17 : i32
    %28 = tpu.dynamic_rotate %8 by %c17_i32 dim 1 : vector<8x256xf32>, i32 -> vector<8x256xf32>
    %cst_8 = arith.constant 0.000000e+00 : f32
    %29 = vector.broadcast %cst_8 : f32 to vector<8x256xf32>
    %30 = arith.select %20, %28, %29 : vector<8x256xi1>, vector<8x256xf32>
    %31 = vector.extract_strided_slice %24 {offsets = [0, 0], sizes = [8, 1], strides = [1, 1]} : vector<8x9xf32> to vector<8x1xf32>
    %32 = vector.broadcast %31 : vector<8x1xf32> to vector<8x256xf32>
    %33 = arith.mulf %30, %32 : vector<8x256xf32>
    %34 = arith.addf %27, %33 : vector<8x256xf32>
    %c16_i32_9 = arith.constant 16 : i32
    %35 = tpu.dynamic_rotate %8 by %c16_i32_9 dim 1 : vector<8x256xf32>, i32 -> vector<8x256xf32>
    %cst_10 = arith.constant 0.000000e+00 : f32
    %36 = vector.broadcast %cst_10 : f32 to vector<8x256xf32>
    %37 = arith.select %13, %35, %36 : vector<8x256xi1>, vector<8x256xf32>
    %38 = vector.extract_strided_slice %24 {offsets = [0, 1], sizes = [8, 1], strides = [1, 1]} : vector<8x9xf32> to vector<8x1xf32>
    %39 = vector.broadcast %38 : vector<8x1xf32> to vector<8x256xf32>
    %40 = arith.mulf %37, %39 : vector<8x256xf32>
    %41 = arith.addf %34, %40 : vector<8x256xf32>
    %c15_i32_11 = arith.constant 15 : i32
    %42 = tpu.dynamic_rotate %8 by %c15_i32_11 dim 1 : vector<8x256xf32>, i32 -> vector<8x256xf32>
    %cst_12 = arith.constant 0.000000e+00 : f32
    %43 = vector.broadcast %cst_12 : f32 to vector<8x256xf32>
    %44 = arith.select %21, %42, %43 : vector<8x256xi1>, vector<8x256xf32>
    %45 = vector.extract_strided_slice %24 {offsets = [0, 2], sizes = [8, 1], strides = [1, 1]} : vector<8x9xf32> to vector<8x1xf32>
    %46 = vector.broadcast %45 : vector<8x1xf32> to vector<8x256xf32>
    %47 = arith.mulf %44, %46 : vector<8x256xf32>
    %48 = arith.addf %41, %47 : vector<8x256xf32>
    %c1_i32_13 = arith.constant 1 : i32
    %49 = tpu.dynamic_rotate %8 by %c1_i32_13 dim 1 : vector<8x256xf32>, i32 -> vector<8x256xf32>
    %cst_14 = arith.constant 0.000000e+00 : f32
    %50 = vector.broadcast %cst_14 : f32 to vector<8x256xf32>
    %51 = arith.select %17, %49, %50 : vector<8x256xi1>, vector<8x256xf32>
    %52 = vector.extract_strided_slice %24 {offsets = [0, 3], sizes = [8, 1], strides = [1, 1]} : vector<8x9xf32> to vector<8x1xf32>
    %53 = vector.broadcast %52 : vector<8x1xf32> to vector<8x256xf32>
    %54 = arith.mulf %51, %53 : vector<8x256xf32>
    %55 = arith.addf %48, %54 : vector<8x256xf32>
    %c255_i32 = arith.constant 255 : i32
    %56 = tpu.dynamic_rotate %8 by %c255_i32 dim 1 : vector<8x256xf32>, i32 -> vector<8x256xf32>
    %cst_15 = arith.constant 0.000000e+00 : f32
    %57 = vector.broadcast %cst_15 : f32 to vector<8x256xf32>
    %58 = arith.select %19, %56, %57 : vector<8x256xi1>, vector<8x256xf32>
    %59 = vector.extract_strided_slice %24 {offsets = [0, 5], sizes = [8, 1], strides = [1, 1]} : vector<8x9xf32> to vector<8x1xf32>
    %60 = vector.broadcast %59 : vector<8x1xf32> to vector<8x256xf32>
    %61 = arith.mulf %58, %60 : vector<8x256xf32>
    %62 = arith.addf %55, %61 : vector<8x256xf32>
    %c241_i32 = arith.constant 241 : i32
    %63 = tpu.dynamic_rotate %8 by %c241_i32 dim 1 : vector<8x256xf32>, i32 -> vector<8x256xf32>
    %cst_16 = arith.constant 0.000000e+00 : f32
    %64 = vector.broadcast %cst_16 : f32 to vector<8x256xf32>
    %65 = arith.select %22, %63, %64 : vector<8x256xi1>, vector<8x256xf32>
    %66 = vector.extract_strided_slice %24 {offsets = [0, 6], sizes = [8, 1], strides = [1, 1]} : vector<8x9xf32> to vector<8x1xf32>
    %67 = vector.broadcast %66 : vector<8x1xf32> to vector<8x256xf32>
    %68 = arith.mulf %65, %67 : vector<8x256xf32>
    %69 = arith.addf %62, %68 : vector<8x256xf32>
    %c240_i32_17 = arith.constant 240 : i32
    %70 = tpu.dynamic_rotate %8 by %c240_i32_17 dim 1 : vector<8x256xf32>, i32 -> vector<8x256xf32>
    %cst_18 = arith.constant 0.000000e+00 : f32
    %71 = vector.broadcast %cst_18 : f32 to vector<8x256xf32>
    %72 = arith.select %15, %70, %71 : vector<8x256xi1>, vector<8x256xf32>
    %73 = vector.extract_strided_slice %24 {offsets = [0, 7], sizes = [8, 1], strides = [1, 1]} : vector<8x9xf32> to vector<8x1xf32>
    %74 = vector.broadcast %73 : vector<8x1xf32> to vector<8x256xf32>
    %75 = arith.mulf %72, %74 : vector<8x256xf32>
    %76 = arith.addf %69, %75 : vector<8x256xf32>
    %c239_i32 = arith.constant 239 : i32
    %77 = tpu.dynamic_rotate %8 by %c239_i32 dim 1 : vector<8x256xf32>, i32 -> vector<8x256xf32>
    %cst_19 = arith.constant 0.000000e+00 : f32
    %78 = vector.broadcast %cst_19 : f32 to vector<8x256xf32>
    %79 = arith.select %23, %77, %78 : vector<8x256xi1>, vector<8x256xf32>
    %80 = vector.extract_strided_slice %24 {offsets = [0, 8], sizes = [8, 1], strides = [1, 1]} : vector<8x9xf32> to vector<8x1xf32>
    %81 = vector.broadcast %80 : vector<8x1xf32> to vector<8x256xf32>
    %82 = arith.mulf %79, %81 : vector<8x256xf32>
    %83 = arith.addf %76, %82 : vector<8x256xf32>
    %c0_20 = arith.constant 0 : index
    %c0_21 = arith.constant 0 : index
    %84 = vector.load %arg5[%c0_20, %c0_21] : memref<32x8xf32, #tpu.memory_space<vmem>>, vector<32x8xf32>
    %cst_22 = arith.constant dense<0.000000e+00> : vector<32x256xf32>
    %85 = tpu.matmul %84, %83, %cst_22 {dimension_numbers = #tpu.dot_dimension_numbers<[1], [0], [0], [1], [0, 0, 1, 1], [], []>} : vector<32x8xf32>, vector<8x256xf32>, vector<32x256xf32> -> vector<32x256xf32>
    %c0_23 = arith.constant 0 : index
    %c0_24 = arith.constant 0 : index
    %86 = vector.load %arg6[%c0_23, %c0_24] : memref<32x1xf32, #tpu.memory_space<vmem>>, vector<32x1xf32>
    %87 = vector.broadcast %86 : vector<32x1xf32> to vector<32x256xf32>
    %88 = arith.addf %85, %87 : vector<32x256xf32>
    %89 = arith.addf %0, %88 : vector<32x256xf32>
    %cst_25 = arith.constant 0.000000e+00 : f32
    %90 = vector.broadcast %cst_25 : f32 to vector<32x256xf32>
    %91 = arith.maximumf %89, %90 : vector<32x256xf32>
    %c0_26 = arith.constant 0 : index
    %c0_27 = arith.constant 0 : index
    %92 = vector.load %arg7[%c0_26, %c0_27] : memref<32x256xf32, #tpu.memory_space<vmem>>, vector<32x256xf32>
    tpu.vector_store %arg7[%c0_26, %c0_27], %91 {strides = array<i32>} : memref<32x256xf32, #tpu.memory_space<vmem>>, vector<32x256xf32>,
    return
  }
  func.func @transform_0(%arg0: i32) -> (i32, i32) {
    %c0_i32 = arith.constant 0 : i32
    %c0_i32_0 = arith.constant 0 : i32
    return %arg0, %c0_i32 : i32, i32
  }
  func.func @transform_1(%arg0: i32) -> (i32, i32) {
    %c0_i32 = arith.constant 0 : i32
    %c0_i32_0 = arith.constant 0 : i32
    %c0_i32_1 = arith.constant 0 : i32
    return %c0_i32, %c0_i32_0 : i32, i32
  }
  func.func @transform_2(%arg0: i32) -> (i32, i32) {
    %c0_i32 = arith.constant 0 : i32
    %c0_i32_0 = arith.constant 0 : i32
    %c0_i32_1 = arith.constant 0 : i32
    return %c0_i32, %c0_i32_0 : i32, i32
  }
  func.func @transform_3(%arg0: i32) -> (i32, i32) {
    %c0_i32 = arith.constant 0 : i32
    %c0_i32_0 = arith.constant 0 : i32
    %c0_i32_1 = arith.constant 0 : i32
    return %c0_i32, %c0_i32_0 : i32, i32
  }
  func.func @transform_4(%arg0: i32) -> (i32, i32) {
    %c0_i32 = arith.constant 0 : i32
    %c0_i32_0 = arith.constant 0 : i32
    %c0_i32_1 = arith.constant 0 : i32
    return %c0_i32, %c0_i32_0 : i32, i32
  }
  func.func @transform_5(%arg0: i32) -> (i32, i32) {
    %c0_i32 = arith.constant 0 : i32
    %c0_i32_0 = arith.constant 0 : i32
    %c0_i32_1 = arith.constant 0 : i32
    return %c0_i32, %c0_i32_0 : i32, i32
  }
  func.func @transform_6(%arg0: i32) -> (i32, i32) {
    %c0_i32 = arith.constant 0 : i32
    %c0_i32_0 = arith.constant 0 : i32
    return %arg0, %c0_i32 : i32, i32
  }
}

</mosaic_0001>

<llo_original>
// kernel: tpu_custom_call.1
$region0: #{tpu_custom_call.1}
  #allocation0 [shape = 'u32[]', space=smem, size = 0x4, offset = 0x4, fixed_abs, tag = 'smem constant byte address 0x4 - core index']
  #allocation1 [shape = 'u32[144,128]{1,0:T(1,128)}', space=vmem, size = 0x12000, scoped, tag = 'internal scratch']
  %s0 = inlined_call_operand.vmem [shape: f32[32,256], index: 0, kind: input, shape index: {}]
  %s1 = inlined_call_operand.vmem [shape: bf16[8,32], index: 1, kind: input, shape index: {}]
  %s2 = inlined_call_operand.vmem [shape: f32[8,1], index: 2, kind: input, shape index: {}]
  %s3 = inlined_call_operand.vmem [shape: f32[8,9], index: 3, kind: input, shape index: {}]
  %s4 = inlined_call_operand.vmem [shape: f32[32,8], index: 4, kind: input, shape index: {}]
  %s5 = inlined_call_operand.vmem [shape: f32[32,1], index: 5, kind: input, shape index: {}]
  %s6 = inlined_call_operand.hbm [shape: f32[32,256], index: 6, kind: output, shape index: {}]
  %s7 = sld [smem:[#allocation0]]
  $region34: #{tpu_custom_call.1} parent=0
    _
  %s9 = ssub.s32 1, %s7
  %s10 = scalar_select 0, %s9, %s7
  $region1: #{tpu_custom_call.1} parent=0
    #allocation2 [shape = 'u8[32768]{0}', space=vmem, size = 0x8000, scoped, tag = 'output window, operand 0, single buffered']
    #allocation3 [shape = 's32[1]{0}', space=sflag, size = 0x4, scoped, tag = 'scoped memory for tpu_custom_call.1']
    %11 = vsyncpa [#allocation3], 0
    // Predicated region
    $region2: #{tpu_custom_call.1} parent=1 // pred_check
      _
    $region3: #{tpu_custom_call.1} parent=1 // pred_check_branch
      %13 = sbr.rel (0) target = $region5
    $region4: #{tpu_custom_call.1} parent=1 // pred_region
      _
    $region5: #{tpu_custom_call.1} parent=1 // pred_fallthru
      _
    // Predicated region
    $region6: #{tpu_custom_call.1} parent=1 // pred_check
      _
    $region7: #{tpu_custom_call.1} parent=1 // pred_check_branch
      %15 = sbr.rel (0) target = $region9
    $region8: #{tpu_custom_call.1} parent=1 // pred_region
      _
    $region9: #{tpu_custom_call.1} parent=1 // pred_fallthru
      _
    // Predicated region
    $region10: #{tpu_custom_call.1} parent=1 // pred_check
      _
    $region11: #{tpu_custom_call.1} parent=1 // pred_check_branch
      %17 = sbr.rel (0) target = $region13
    $region12: #{tpu_custom_call.1} parent=1 // pred_region
      _
    $region13: #{tpu_custom_call.1} parent=1 // pred_fallthru
      _
    // Predicated region
    $region14: #{tpu_custom_call.1} parent=1 // pred_check
      _
    $region15: #{tpu_custom_call.1} parent=1 // pred_check_branch
      %19 = sbr.rel (0) target = $region17
    $region16: #{tpu_custom_call.1} parent=1 // pred_region
      _
    $region17: #{tpu_custom_call.1} parent=1 // pred_fallthru
      _
    // Predicated region
    $region18: #{tpu_custom_call.1} parent=1 // pred_check
      _
    $region19: #{tpu_custom_call.1} parent=1 // pred_check_branch
      %21 = sbr.rel (0) target = $region21
    $region20: #{tpu_custom_call.1} parent=1 // pred_region
      _
    $region21: #{tpu_custom_call.1} parent=1 // pred_fallthru
      _
    // Predicated region
    $region22: #{tpu_custom_call.1} parent=1 // pred_check
      _
    $region23: #{tpu_custom_call.1} parent=1 // pred_check_branch
      %23 = sbr.rel (0) target = $region25
    $region24: #{tpu_custom_call.1} parent=1 // pred_region
      _
    $region25: #{tpu_custom_call.1} parent=1 // pred_fallthru
      _
    %v25 = vld [vmem:[%s0] sm:$0xff]
    %v26 = vld [vmem:[%s0 + $0x8] sm:$0xff]
    %v27 = vld [vmem:[%s0 + $0x10] sm:$0xff]
    %v28 = vld [vmem:[%s0 + $0x18] sm:$0xff]
    %v29 = vld [vmem:[%s0 + $0x20] sm:$0xff]
    %v30 = vld [vmem:[%s0 + $0x28] sm:$0xff]
    %v31 = vld [vmem:[%s0 + $0x30] sm:$0xff]
    %v32 = vld [vmem:[%s0 + $0x38] sm:$0xff]
    %v33 = vld [vmem:[%s1] sm:$0xf]
    %v34 = vpack.c.bf16 %v27, %v25
    %v35 = vpack.c.bf16 %v28, %v26
    %v36 = vpack.c.bf16 %v31, %v29
    %v37 = vpack.c.bf16 %v32, %v30
    %v38 = vld [vmem:[%s2] sm:$0xff]
    %40 = vset.pattern.permute.xlu0 0
    %41 = vperm.xlu0 %40, %v38
    %v42 = vpop.permute.xlu0 %41
    %vm44 = vcmask 261120
    %v46 = vsel %vm44, %v33, 0
    %48 = vmatprep.subr.bf16.mxu0 %v35
    %49 = vmatpush1.bf16.msra.mxu0 %v34
    %50 = vmatprep.subr.bf16.mxu0 %v37
    %51 = vmatpush1.bf16.msra.mxu0 %v36
    %52 = vmatprep.subr.bf16.mxu0 0
    %53 = vmatpush1.bf16.msra.mxu0 0
    %54 = vmatprep.subr.bf16.mxu0 0
    %55 = vmatpush1.bf16.msra.mxu0 0
    %56 = vmatprep.subr.bf16.mxu0 0
    %57 = vmatpush1.bf16.msra.mxu0 0
    %58 = vmatprep.subr.bf16.mxu0 0
    %59 = vmatpush1.bf16.msra.mxu0 0
    %60 = vmatprep.subr.bf16.mxu0 0
    %61 = vmatpush1.bf16.msra.mxu0 0
    %62 = vmatprep.subr.bf16.mxu0 0
    %63 = vmatpush1.bf16.msra.mxu0 0
    %64 = vmatprep.subr.bf16.mxu0 0
    %65 = vmatpush1.bf16.msra.mxu0 0
    %66 = vmatprep.subr.bf16.mxu0 0
    %67 = vmatpush1.bf16.msra.mxu0 0
    %68 = vmatprep.subr.bf16.mxu0 0
    %69 = vmatpush1.bf16.msra.mxu0 0
    %70 = vmatprep.subr.bf16.mxu0 0
    %71 = vmatpush1.bf16.msra.mxu0 0
    %72 = vmatprep.subr.bf16.mxu0 0
    %73 = vmatpush1.bf16.msra.mxu0 0
    %74 = vmatprep.subr.bf16.mxu0 0
    %75 = vmatpush1.bf16.msra.mxu0 0
    %76 = vmatprep.subr.bf16.mxu0 0
    %77 = vmatpush1.bf16.msra.mxu0 0
    %78 = vmatprep.subr.bf16.mxu0 0
    %79 = vmatpush1.bf16.msra.mxu0 0
    %80 = vmatprep.mubr.bf16.mxu0 0
    %81 = vmatmul.mubr.bf16.gmra.mrb[0].mxu0 %v46
    %v82 = vpop.f32.mrb[0].mxu0
    %v83 = vadd.f32 %v42, %v82
    %v84 = vpop.f32.mrb[0].mxu0
    %v85 = vadd.f32 %v42, %v84
    %v86 = vpop.f32.mrb[0].mxu0
    %v87 = vpop.f32.mrb[0].mxu0
    %88 = vdwg.mxu0
    %v89 = vmax.f32 %v83, 0.0
    %v90 = vmax.f32 %v85, 0.0
    %v91 = vlaneseq
    %v92 = vand.u32 %v91, 127
    %v93 = vadd.s32 %v92, 128
    %v94 = vand.u32 %v92, 15
    %v95 = vand.u32 %v93, 15
    %vm96 = vcmp.ge.s32.totalorder %v92, 16
    %vm97 = vcmp.ge.s32.totalorder %v93, 16
    %vm98 = vcmp.lt.s32.totalorder %v92, 240
    %vm99 = vcmp.lt.s32.totalorder %v93, 240
    %vm100 = vcmp.ge.s32.totalorder %v94, 1
    %vm101 = vcmp.ge.s32.totalorder %v95, 1
    %vm102 = vcmp.le.s32.totalorder %v94, 14
    %vm103 = vcmp.le.s32.totalorder %v95, 14
    %vm104 = vmand %vm96, %vm100
    %vm105 = vmand %vm97, %vm101
    %vm106 = vmand %vm96, %vm102
    %vm107 = vmand %vm97, %vm103
    %vm108 = vmand %vm98, %vm100
    %vm109 = vmand %vm99, %vm101
    %vm110 = vmand %vm98, %vm102
    %vm111 = vmand %vm99, %vm103
    %v112 = vld [vmem:[%s3] sm:$0xff]
    %114 = vset.pattern.permute.xlu0 4
    %115 = vperm.xlu0 %114, %v112
    %v116 = vpop.permute.xlu0 %115
    %v118 = vmul.f32 %v89, %v116
    %v119 = vmul.f32 %v90, %v116
    %120 = vrot.lane.b32.xlu0 %v89, 17
    %v121 = vpop.permute.xlu0 %120
    %122 = vrot.lane.b32.xlu0 %v90, 17
    %v123 = vpop.permute.xlu0 %122
    %vm124 = vcmp.lt.s32.totalorder %v92, 17
    %v125 = vsel %vm124, %v121, %v123
    %v126 = vsel %vm124, %v123, %v121
    %v127 = vsel %vm104, %v126, 0.0
    %v128 = vsel %vm105, %v125, 0.0
    %129 = vset.pattern.permute.xlu0 0
    %130 = vperm.xlu0 %129, %v112
    %v131 = vpop.permute.xlu0 %130
    %v133 = vmul.f32 %v127, %v131
    %v134 = vmul.f32 %v128, %v131
    %v135 = vadd.f32 %v118, %v133
    %v136 = vadd.f32 %v119, %v134
    %137 = vrot.lane.b32.xlu0 %v89, 16
    %v138 = vpop.permute.xlu0 %137
    %139 = vrot.lane.b32.xlu0 %v90, 16
    %v140 = vpop.permute.xlu0 %139
    %vm141 = vcmp.lt.s32.totalorder %v92, 16
    %v142 = vsel %vm141, %v138, %v140
    %v143 = vsel %vm141, %v140, %v138
    %v144 = vsel %vm96, %v143, 0.0
    %v145 = vsel %vm97, %v142, 0.0
    %146 = vset.pattern.permute.xlu0 1
    %147 = vperm.xlu0 %146, %v112
    %v148 = vpop.permute.xlu0 %147
    %v150 = vmul.f32 %v144, %v148
    %v151 = vmul.f32 %v145, %v148
    %v152 = vadd.f32 %v135, %v150
    %v153 = vadd.f32 %v136, %v151
    %154 = vrot.lane.b32.xlu0 %v89, 15
    %v155 = vpop.permute.xlu0 %154
    %156 = vrot.lane.b32.xlu0 %v90, 15
    %v157 = vpop.permute.xlu0 %156
    %vm158 = vcmp.lt.s32.totalorder %v92, 15
    %v159 = vsel %vm158, %v155, %v157
    %v160 = vsel %vm158, %v157, %v155
    %v161 = vsel %vm106, %v160, 0.0
    %v162 = vsel %vm107, %v159, 0.0
    %163 = vset.pattern.permute.xlu0 2
    %164 = vperm.xlu0 %163, %v112
    %v165 = vpop.permute.xlu0 %164
    %v167 = vmul.f32 %v161, %v165
    %v168 = vmul.f32 %v162, %v165
    %v169 = vadd.f32 %v152, %v167
    %v170 = vadd.f32 %v153, %v168
    %171 = vrot.lane.b32.xlu0 %v89, 1
    %v172 = vpop.permute.xlu0 %171
    %173 = vrot.lane.b32.xlu0 %v90, 1
    %v174 = vpop.permute.xlu0 %173
    %vm175 = vcmp.lt.s32.totalorder %v92, 1
    %v176 = vsel %vm175, %v172, %v174
    %v177 = vsel %vm175, %v174, %v172
    %v178 = vsel %vm100, %v177, 0.0
    %v179 = vsel %vm101, %v176, 0.0
    %180 = vset.pattern.permute.xlu0 3
    %181 = vperm.xlu0 %180, %v112
    %v182 = vpop.permute.xlu0 %181
    %v184 = vmul.f32 %v178, %v182
    %v185 = vmul.f32 %v179, %v182
    %v186 = vadd.f32 %v169, %v184
    %v187 = vadd.f32 %v170, %v185
    %188 = vrot.lane.b32.xlu0 %v89, 127
    %v189 = vpop.permute.xlu0 %188
    %190 = vrot.lane.b32.xlu0 %v90, 127
    %v191 = vpop.permute.xlu0 %190
    %vm192 = vcmp.lt.s32.totalorder %v92, 127
    %v193 = vsel %vm192, %v189, %v191
    %v194 = vsel %vm192, %v191, %v189
    %v195 = vsel %vm102, %v193, 0.0
    %v196 = vsel %vm103, %v194, 0.0
    %197 = vset.pattern.permute.xlu0 5
    %198 = vperm.xlu0 %197, %v112
    %v199 = vpop.permute.xlu0 %198
    %v201 = vmul.f32 %v195, %v199
    %v202 = vmul.f32 %v196, %v199
    %v203 = vadd.f32 %v186, %v201
    %v204 = vadd.f32 %v187, %v202
    %205 = vrot.lane.b32.xlu0 %v89, 113
    %v206 = vpop.permute.xlu0 %205
    %207 = vrot.lane.b32.xlu0 %v90, 113
    %v208 = vpop.permute.xlu0 %207
    %vm209 = vcmp.lt.s32.totalorder %v92, 113
    %v210 = vsel %vm209, %v206, %v208
    %v211 = vsel %vm209, %v208, %v206
    %v212 = vsel %vm108, %v210, 0.0
    %v213 = vsel %vm109, %v211, 0.0
    %214 = vset.pattern.permute.xlu0 6
    %215 = vperm.xlu0 %214, %v112
    %v216 = vpop.permute.xlu0 %215
    %v218 = vmul.f32 %v212, %v216
    %v219 = vmul.f32 %v213, %v216
    %v220 = vadd.f32 %v203, %v218
    %v221 = vadd.f32 %v204, %v219
    %222 = vrot.lane.b32.xlu0 %v89, 112
    %v223 = vpop.permute.xlu0 %222
    %224 = vrot.lane.b32.xlu0 %v90, 112
    %v225 = vpop.permute.xlu0 %224
    %vm226 = vcmp.lt.s32.totalorder %v92, 112
    %v227 = vsel %vm226, %v223, %v225
    %v228 = vsel %vm226, %v225, %v223
    %v229 = vsel %vm98, %v227, 0.0
    %v230 = vsel %vm99, %v228, 0.0
    %231 = vset.pattern.permute.xlu0 7
    %232 = vperm.xlu0 %231, %v112
    %v233 = vpop.permute.xlu0 %232
    %v235 = vmul.f32 %v229, %v233
    %v236 = vmul.f32 %v230, %v233
    %v237 = vadd.f32 %v220, %v235
    %v238 = vadd.f32 %v221, %v236
    %239 = vrot.lane.b32.xlu0 %v89, 111
    %v240 = vpop.permute.xlu0 %239
    %241 = vrot.lane.b32.xlu0 %v90, 111
    %v242 = vpop.permute.xlu0 %241
    %vm243 = vcmp.lt.s32.totalorder %v92, 111
    %v244 = vsel %vm243, %v240, %v242
    %v245 = vsel %vm243, %v242, %v240
    %v246 = vsel %vm110, %v244, 0.0
    %v247 = vsel %vm111, %v245, 0.0
    %248 = vset.pattern.permute.xlu0 8
    %249 = vperm.xlu0 %248, %v112
    %v250 = vpop.permute.xlu0 %249
    %v252 = vmul.f32 %v246, %v250
    %v253 = vmul.f32 %v247, %v250
    %v254 = vadd.f32 %v237, %v252
    %v255 = vadd.f32 %v238, %v253
    %v256 = vld [vmem:[%s4] sm:$0xff]
    %v257 = vld [vmem:[%s4 + $0x8] sm:$0xff]
    %v258 = vld [vmem:[%s4 + $0x10] sm:$0xff]
    %v259 = vld [vmem:[%s4 + $0x18] sm:$0xff]
    %v260 = vld [vmem:[%s5] sm:$0xff]
    %v261 = vld [vmem:[%s5 + $0x8] sm:$0xff]
    %v262 = vld [vmem:[%s5 + $0x10] sm:$0xff]
    %v263 = vld [vmem:[%s5 + $0x18] sm:$0xff]
    %265 = vset.pattern.permute.xlu0 0
    %266 = vperm.xlu0 %265, %v260
    %v267 = vpop.permute.xlu0 %266
    %270 = vset.pattern.permute.xlu0 0
    %271 = vperm.xlu0 %270, %v261
    %v272 = vpop.permute.xlu0 %271
    %275 = vset.pattern.permute.xlu0 0
    %276 = vperm.xlu0 %275, %v262
    %v277 = vpop.permute.xlu0 %276
    %280 = vset.pattern.permute.xlu0 0
    %281 = vperm.xlu0 %280, %v263
    %v282 = vpop.permute.xlu0 %281
    %vm284 = vcmask 64512
    %v286 = vsel %vm284, %v256, 0
    %v289 = vsel %vm284, %v257, 0
    %v292 = vsel %vm284, %v258, 0
    %v295 = vsel %vm284, %v259, 0
    %297 = vmatprep.subr.mxu0 %v255
    %298 = vmatpush1.msra.mxu0 %v254
    %299 = vmatprep.subr.mxu0 0.0
    %300 = vmatpush1.msra.mxu0 0.0
    %301 = vmatprep.subr.mxu0 0.0
    %302 = vmatpush1.msra.mxu0 0.0
    %303 = vmatprep.subr.mxu0 0.0
    %304 = vmatpush1.msra.mxu0 0.0
    %305 = vmatprep.subr.mxu0 0.0
    %306 = vmatpush1.msra.mxu0 0.0
    %307 = vmatprep.subr.mxu0 0.0
    %308 = vmatpush1.msra.mxu0 0.0
    %309 = vmatprep.subr.mxu0 0.0
    %310 = vmatpush1.msra.mxu0 0.0
    %311 = vmatprep.subr.mxu0 0.0
    %312 = vmatpush1.msra.mxu0 0.0
    %313 = vmatprep.subr.mxu0 0.0
    %314 = vmatpush1.msra.mxu0 0.0
    %315 = vmatprep.subr.mxu0 0.0
    %316 = vmatpush1.msra.mxu0 0.0
    %317 = vmatprep.subr.mxu0 0.0
    %318 = vmatpush1.msra.mxu0 0.0
    %319 = vmatprep.subr.mxu0 0.0
    %320 = vmatpush1.msra.mxu0 0.0
    %321 = vmatprep.subr.mxu0 0.0
    %322 = vmatpush1.msra.mxu0 0.0
    %323 = vmatprep.subr.mxu0 0.0
    %324 = vmatpush1.msra.mxu0 0.0
    %325 = vmatprep.subr.mxu0 0.0
    %326 = vmatpush1.msra.mxu0 0.0
    %327 = vmatprep.subr.mxu0 0.0
    %328 = vmatpush1.msra.mxu0 0.0
    %329 = vmatprep.subr.mxu0 0.0
    %330 = vmatpush1.msra.mxu0 0.0
    %331 = vmatprep.subr.mxu0 0.0
    %332 = vmatpush1.msra.mxu0 0.0
    %333 = vmatprep.subr.mxu0 0.0
    %334 = vmatpush1.msra.mxu0 0.0
    %335 = vmatprep.subr.mxu0 0.0
    %336 = vmatpush1.msra.mxu0 0.0
    %337 = vmatprep.subr.mxu0 0.0
    %338 = vmatpush1.msra.mxu0 0.0
    %339 = vmatprep.subr.mxu0 0.0
    %340 = vmatpush1.msra.mxu0 0.0
    %341 = vmatprep.subr.mxu0 0.0
    %342 = vmatpush1.msra.mxu0 0.0
    %343 = vmatprep.subr.mxu0 0.0
    %344 = vmatpush1.msra.mxu0 0.0
    %345 = vmatprep.subr.mxu0 0.0
    %346 = vmatpush1.msra.mxu0 0.0
    %347 = vmatprep.subr.mxu0 0.0
    %348 = vmatpush1.msra.mxu0 0.0
    %349 = vmatprep.subr.mxu0 0.0
    %350 = vmatpush1.msra.mxu0 0.0
    %351 = vmatprep.subr.mxu0 0.0
    %352 = vmatpush1.msra.mxu0 0.0
    %353 = vmatprep.subr.mxu0 0.0
    %354 = vmatpush1.msra.mxu0 0.0
    %355 = vmatprep.subr.mxu0 0.0
    %356 = vmatpush1.msra.mxu0 0.0
    %357 = vmatprep.subr.mxu0 0.0
    %358 = vmatpush1.msra.mxu0 0.0
    %359 = vmatprep.subr.mxu0 0.0
    %360 = vmatpush1.msra.mxu0 0.0
    %361 = vmatprep.mubr.f32.mxu0 0.0
    %362 = vmatmul.mubr.f32.gmra.mrb[0].mxu0 %v286
    %v363 = vpop.f32.mrb[0].mxu0
    %v364 = vadd.f32 %v267, %v363
    %v365 = vpop.f32.mrb[0].mxu0
    %v366 = vadd.f32 %v267, %v365
    %367 = vmatprep.mubr.f32.mxu0 0.0
    %368 = vmatmul.mubr.f32.gmra.mrb[0].mxu0 %v289
    %v369 = vpop.f32.mrb[0].mxu0
    %v370 = vadd.f32 %v272, %v369
    %v371 = vpop.f32.mrb[0].mxu0
    %v372 = vadd.f32 %v272, %v371
    %373 = vmatprep.mubr.f32.mxu0 0.0
    %374 = vmatmul.mubr.f32.gmra.mrb[0].mxu0 %v292
    %v375 = vpop.f32.mrb[0].mxu0
    %v376 = vadd.f32 %v277, %v375
    %v377 = vpop.f32.mrb[0].mxu0
    %v378 = vadd.f32 %v277, %v377
    %379 = vmatprep.mubr.f32.mxu0 0.0
    %380 = vmatmul.mubr.f32.gmra.mrb[0].mxu0 %v295
    %v381 = vpop.f32.mrb[0].mxu0
    %v382 = vadd.f32 %v282, %v381
    %v383 = vpop.f32.mrb[0].mxu0
    %v384 = vadd.f32 %v282, %v383
    %385 = vdwg.mxu0
    %v386 = vadd.f32 %v25, %v364
    %v387 = vadd.f32 %v26, %v366
    %v388 = vadd.f32 %v27, %v370
    %v389 = vadd.f32 %v28, %v372
    %v390 = vadd.f32 %v29, %v376
    %v391 = vadd.f32 %v30, %v378
    %v392 = vadd.f32 %v31, %v382
    %v393 = vadd.f32 %v32, %v384
    %v394 = vmax.f32 %v386, 0.0
    %v395 = vmax.f32 %v387, 0.0
    %v396 = vmax.f32 %v388, 0.0
    %v397 = vmax.f32 %v389, 0.0
    %v398 = vmax.f32 %v390, 0.0
    %v399 = vmax.f32 %v391, 0.0
    %v400 = vmax.f32 %v392, 0.0
    %v401 = vmax.f32 %v393, 0.0
    %402 = vst [vmem:[#allocation2] sm:$0xff] %v394
    %403 = vst [vmem:[#allocation2 + $0x8] sm:$0xff] %v395
    %404 = vst [vmem:[#allocation2 + $0x10] sm:$0xff] %v396
    %405 = vst [vmem:[#allocation2 + $0x18] sm:$0xff] %v397
    %406 = vst [vmem:[#allocation2 + $0x20] sm:$0xff] %v398
    %407 = vst [vmem:[#allocation2 + $0x28] sm:$0xff] %v399
    %408 = vst [vmem:[#allocation2 + $0x30] sm:$0xff] %v400
    %409 = vst [vmem:[#allocation2 + $0x38] sm:$0xff] %v401
    // Predicated region
    $region26: #{tpu_custom_call.1} parent=1 // pred_check
      _
    $region27: #{tpu_custom_call.1} parent=1 // pred_check_branch
      %411 = sbr.rel (0) target = $region29
    $region28: #{tpu_custom_call.1} parent=1 // pred_region
      %s413 = ssub.s32 1024, 1024
      %414 = vsyncadd [#allocation3], %s413
      %s415 = sshll.u32 [#allocation2], 4
      %s416 = int_to_ptr.vmem [resolvable:$true] %s415
      %421 = dma.vmem_to_hbm [thread:$0]  %s416, 1024, %s6, [#allocation3], 256, 256, 16
    $region29: #{tpu_custom_call.1} parent=1 // pred_fallthru
      _
    // Predicated region
    $region30: #{tpu_custom_call.1} parent=1 // pred_check
      _
    $region31: #{tpu_custom_call.1} parent=1 // pred_check_branch
      %423 = sbr.rel (0) target = $region33
    $region32: #{tpu_custom_call.1} parent=1 // pred_region
      %424 = dma.done [#allocation3], 1024
    $region33: #{tpu_custom_call.1} parent=1 // pred_fallthru
      _
    %425 = vsyncpa [#allocation3], 1

</llo_original>
